<compile_context>
chip_gen: v7x
topology: tpu7x:2x2x1
jax: 0.10.0
libtpu: 0.0.40
codegen_flags: <defaults>
</compile_context>

<pallas_src>
import functools
import math

import jax
import jax.numpy as jnp
from jax import lax
from jax.experimental import pallas as pl
from jax.experimental.pallas import tpu as pltpu


# ----------------------------- small helpers --------------------------------

def _round_up(a, b):
    return (a + b - 1) // b * b


def _cdiv(a, b):
    return (a + b - 1) // b


def _sublane(itemsize):
    # sublane granule for a packed dtype: f32 -> 8, bf16 -> 16, int8 -> 32
    return max(8, 32 // max(1, itemsize))


def _pick_block(dim, candidates=(512, 256, 128)):
    for c in candidates:
        if dim >= c and dim % c == 0:
            return c
    return dim                       # non-128-multiple dims use the full extent


def _vmem_capacity_bytes():
    try:
        return int(pltpu.get_tpu_info().vmem_capacity_bytes)
    except Exception:
        return 64 * 1024 * 1024      # conservative fallback (v7x per-core VMEM)


def _use_int8_mxu():
    # v5e/v6e MXUs run int8 natively (~2x bf16 throughput); v7x dropped int MXU.
    try:
        kind = jax.devices()[0].device_kind.lower()
    except Exception:
        return False
    return ("v5" in kind) or ("v6" in kind)


def _choose_tn(K, N, wbytes, budget):
    """Largest out-feature tile whose weight slab fits the VMEM budget."""
    tn = N
    if N % 128 != 0:
        return tn
    while tn % 256 == 0:
        bufs = 1 if tn == N else 2           # resident slab is single-buffered
        if bufs * K * tn * wbytes <= budget:
            break
        tn //= 2
    return tn


# --------------------------------- kernels ----------------------------------

def _weight_quant_kernel(mean_ref, w_ref, wq_ref):
    """Per-tile sign(W - mean(W)), transposed to (K, N) layout (lane = out_features)."""
    wc = w_ref[...].astype(jnp.float32) - mean_ref[0]
    sgn = (wc > 0.0).astype(jnp.int32) - (wc < 0.0).astype(jnp.int32)
    wq_ref[...] = sgn.T.astype(wq_ref.dtype)         # per-tile XLU transpose only


def _ln_stats_kernel(x_ref, part_ref, *, eps):
    """Per row-tile max/min of LayerNorm(x); the tiny final reduce runs in XLA.

    Each grid step owns its own (1, 2, 128) partial-stats slot, so the grid axis
    stays fully 'parallel' (megacore-shardable) instead of serializing on an SMEM
    accumulator."""
    z = x_ref[...].astype(jnp.float32)
    mu = jnp.mean(z, axis=-1, keepdims=True)
    zc = z - mu
    var = jnp.mean(zc * zc, axis=-1, keepdims=True)
    y = zc * lax.rsqrt(var + eps)
    row = lax.broadcasted_iota(jnp.int32, (1, 2, 128), 1)
    part_ref[...] = jnp.where(row == 0, jnp.max(y), jnp.min(y))


def _bitlinear_kernel(stats_ref, beta_ref, x_ref, wq_ref, b_ref, o_ref, *,
                      eps, qb, nl_next, use_int8_mm):
    """Fused LayerNorm -> global-absmax quantize -> {-1,0,+1} matmul -> rescale -> bias."""
    # LayerNorm recomputed from x (cheap VPU/EUP work; avoids an x_norm HBM trip).
    z = x_ref[...].astype(jnp.float32)
    mu = jnp.mean(z, axis=-1, keepdims=True)
    zc = z - mu
    var = jnp.mean(zc * zc, axis=-1, keepdims=True)
    y = zc * lax.rsqrt(var + eps)

    max_x = stats_ref[0]
    min_x = stats_ref[1]
    beta = beta_ref[0]

    if nl_next:
        max_val = max_x - min_x              # = max|x_norm - min| since x_norm-min >= 0
        y = y - min_x
    else:
        max_val = jnp.maximum(max_x, -min_x)  # global absmax

    q = jnp.round(y * (qb / max_val))
    q = jnp.where(q >= qb, q - 2.0 * qb, q)   # emulate torch .to(int8) wrap of +Qb

    if use_int8_mm:
        # v5e/v6e: native int8 MXU path, bit-exact (|q| <= 128, w in {-1,0,+1}).
        q8 = q.astype(jnp.int32).astype(jnp.int8)
        acc = jnp.dot(q8, wq_ref[...],
                      preferred_element_type=jnp.int32).astype(jnp.float32)
    else:
        # v7x / fallback: bf16 MXU with f32 accumulation, also exact.  If wq was
        # stored int8 it is upcast in-kernel (halved weight HBM/VMEM kept).
        # TODO(synk): optional v7x refinement -- upcast int8 wq once into a resident
        # bf16 VMEM scratch instead of per grid step.
        acc = jnp.dot(q.astype(jnp.bfloat16), wq_ref[...].astype(jnp.bfloat16),
                      preferred_element_type=jnp.float32)

    out = acc * ((max_val / qb) * beta)
    if nl_next:
        out = out + min_x * beta              # eta * beta
    o_ref[...] = (out + b_ref[...]).astype(o_ref.dtype)


# ------------------------------ weight prep ----------------------------------

@functools.partial(jax.jit, static_argnames=("use_int8",))
def bitlinear_prepare_weights(weights, use_int8=False):
    """One-time weight prep (hoisted off the forward hot path).

    weights: (N, K) torch layout.  Returns (wq (K, N), beta (1,)), with
    wq = sign(W - mean(W)).T stored as int8 (v5e/v6e int8-MXU path, half HBM/VMEM)
    or bf16 (v7x / fallback)."""
    N, K = weights.shape
    w32 = weights.astype(jnp.float32)
    mean = jnp.mean(w32).reshape(1)                         # tiny one-time XLA reduce
    beta = (jnp.sum(jnp.abs(w32)) / (N * K)).reshape(1)

    wq_dtype = jnp.int8 if use_int8 else jnp.bfloat16
    tn_b = _pick_block(N)
    tk_b = _pick_block(K)
    wq = pl.pallas_call(
        _weight_quant_kernel,
        out_shape=jax.ShapeDtypeStruct((K, N), wq_dtype),
        grid=(N // tn_b, K // tk_b),
        in_specs=[
            pl.BlockSpec((1,), lambda i, j: (0,),
                         memory_space=pltpu.MemorySpace.SMEM),
            pl.BlockSpec((tn_b, tk_b), lambda i, j: (i, j)),
        ],
        out_specs=pl.BlockSpec((tk_b, tn_b), lambda i, j: (j, i)),   # block-swap = transpose
        compiler_params=pltpu.CompilerParams(
            dimension_semantics=("parallel", "parallel")),
    )(mean, weights)
    return wq, beta


# --------------------------------- forward -----------------------------------

@functools.partial(jax.jit,
                   static_argnames=("nl_next", "bit", "eps", "block_m", "out_dtype"))
def bitlinear_forward(x, wq, beta, bias=None, *, nl_next=False, bit=8, eps=1e-5,
                      block_m=512, out_dtype=None):
    """BitLinear forward with pre-binarized weights.

    x: (..., K) in the caller's dtype (kept as-is in HBM; upcast in-kernel),
    wq: (K, N) from bitlinear_prepare_weights, beta: (1,), bias: (N,) or None."""
    K, N = wq.shape
    assert x.shape[-1] == K
    lead = x.shape[:-1]
    M = math.prod(lead) if lead else 1
    x2 = x.reshape(M, K)                      # metadata-only reshape, dtype preserved

    odtype = jnp.dtype(x.dtype if out_dtype is None else out_dtype)
    xbytes = x2.dtype.itemsize
    wbytes = wq.dtype.itemsize
    obytes = odtype.itemsize
    cap = _vmem_capacity_bytes()

    # ---- tile selection from the chip's actual VMEM capacity ----------------
    tn = _choose_tn(K, N, wbytes, int(0.40 * cap))
    grid_n = N // tn
    sub = max(_sublane(xbytes), _sublane(obytes))
    w_resident = grid_n == 1
    w_single_buf = w_resident and (K * tn * wbytes >= (2 << 20))
    w_bufs = 1 if w_single_buf else 2

    avail = int(0.85 * cap) - w_bufs * K * tn * wbytes - 2 * tn * 4
    per_row = 2 * K * xbytes + 2 * tn * obytes
    tm_cap = (avail // per_row) // sub * sub if avail > 0 else 0
    tm_cap = max(sub, min(block_m, tm_cap))

    Mp8 = _round_up(M, sub)
    grid_m = max(1, _cdiv(Mp8, tm_cap))
    if grid_m == 1 and Mp8 >= 2 * sub:
        grid_m = 2                             # keep both megacore TCs busy
    tm = _round_up(_cdiv(Mp8, grid_m), sub)
    Mp = tm * grid_m
    if Mp != M:
        # tiny tail pad only (< sub*grid_m rows); zero rows LayerNorm to 0 and the
        # global max (>=0) / min (<=0) of zero-mean rows is unaffected.
        x2 = jnp.pad(x2, ((0, Mp - M), (0, 0)))

    # ---- K1: per-tile max/min of LayerNorm(x); global reduce in XLA ---------
    fp1 = 2 * tm * K * xbytes + (1 << 20)
    limit1 = int(min(0.95 * cap, max(fp1 + max(fp1 // 2, 8 << 20), 32 << 20)))
    part = pl.pallas_call(
        functools.partial(_ln_stats_kernel, eps=eps),
        out_shape=jax.ShapeDtypeStruct((grid_m, 2, 128), jnp.float32),
        grid=(grid_m,),
        in_specs=[pl.BlockSpec((tm, K), lambda i: (i, 0))],
        out_specs=pl.BlockSpec((1, 2, 128), lambda i: (i, 0, 0)),
        compiler_params=pltpu.CompilerParams(
            dimension_semantics=("parallel",), vmem_limit_bytes=limit1),
    )(x2)
    stats = jnp.stack([jnp.max(part[:, 0, 0]), jnp.min(part[:, 1, 0])])

    # ---- K2: fused LN + quantize + binary matmul + rescale + bias -----------
    if bias is None:
        b2 = jnp.zeros((1, N), jnp.float32)
    else:
        b2 = bias.reshape(1, N).astype(jnp.float32)

    use_int8_mm = (wq.dtype == jnp.int8) and _use_int8_mxu()

    if grid_n == 1:
        n_outer = False
    else:
        # grid order minimizing re-streamed HBM bytes (m-outer refetches W per m step,
        # n-outer refetches x per n step).
        n_outer = (grid_n * Mp * K * xbytes + K * N * wbytes
                   <= grid_m * K * N * wbytes + Mp * K * xbytes)

    if n_outer:
        grid2 = (grid_n, grid_m)
        x_map = lambda n, m: (m, 0)
        w_map = lambda n, m: (0, n)
        o_map = lambda n, m: (m, n)
        s_map = lambda n, m: (0,)
    else:
        grid2 = (grid_m, grid_n)
        x_map = lambda m, n: (m, 0)
        w_map = lambda m, n: (0, n)
        o_map = lambda m, n: (m, n)
        s_map = lambda m, n: (0,)

    w_spec_kwargs = {}
    if w_single_buf:
        # constant index_map -> never re-fetched; single-buffer to halve its VMEM
        w_spec_kwargs["pipeline_mode"] = pl.Buffered(1)

    fp2 = (2 * tm * K * xbytes + w_bufs * K * tn * wbytes
           + 2 * tn * 4 + 2 * tm * tn * obytes)
    limit2 = int(min(0.95 * cap, max(fp2 + max(fp2 // 3, 8 << 20), 32 << 20)))

    out = pl.pallas_call(
        functools.partial(_bitlinear_kernel, eps=eps, qb=float(2 ** (bit - 1)),
                          nl_next=nl_next, use_int8_mm=use_int8_mm),
        out_shape=jax.ShapeDtypeStruct((Mp, N), odtype),
        grid=grid2,
        in_specs=[
            pl.BlockSpec((2,), s_map, memory_space=pltpu.MemorySpace.SMEM),
            pl.BlockSpec((1,), s_map, memory_space=pltpu.MemorySpace.SMEM),
            pl.BlockSpec((tm, K), x_map),
            pl.BlockSpec((K, tn), w_map, **w_spec_kwargs),
            pl.BlockSpec((1, tn), w_map),
        ],
        out_specs=pl.BlockSpec((tm, tn), o_map),
        compiler_params=pltpu.CompilerParams(
            dimension_semantics=("parallel", "parallel"),
            vmem_limit_bytes=limit2),
    )(stats, beta, x2, wq, b2)

    return out[:M].reshape(*lead, N)


def bitlinear_apply(x, weights, bias=None, **kw):
    """Convenience one-shot API.  Prefer preparing the weights once and reusing."""
    wq, beta = bitlinear_prepare_weights(weights, use_int8=_use_int8_mxu())
    return bitlinear_forward(x, wq, beta, bias, **kw)


# ------------------------------ pure-JAX reference ---------------------------

def _bitlinear_reference(x, w, b, *, nl_next=False, bit=8, eps=1e-5):
    qb = float(2 ** (bit - 1))
    mu = jnp.mean(x, axis=-1, keepdims=True)
    xc = x - mu
    var = jnp.mean(xc * xc, axis=-1, keepdims=True)
    xn = xc * lax.rsqrt(var + eps)
    if nl_next:
        min_v = jnp.min(xn)
        shifted = xn - min_v
        max_v = jnp.max(jnp.abs(shifted))
        q = jnp.round(shifted * (qb / max_v))
    else:
        max_v = jnp.max(jnp.abs(xn))
        min_v = jnp.min(xn)
        q = jnp.round(xn * (qb / max_v))
    q = jnp.where(q >= qb, q - 2.0 * qb, q)       # int8 wrap of the +Qb boundary
    wq = jnp.sign(w - jnp.mean(w))
    out = jnp.einsum("...k,nk->...n", q, wq)
    dequant = max_v / qb
    beta = jnp.sum(jnp.abs(w)) / (w.shape[0] * w.shape[1])
    out = (out * dequant + min_v) * beta if nl_next else out * dequant * beta
    if b is not None:
        out = out + b
    return out


# ----------------------------------- main ------------------------------------

if __name__ == "__main__":
    B, S = 2, 8
    IN_FEATURES, OUT_FEATURES = 128, 256   # lane-aligned (multiples of 128)

    key = jax.random.PRNGKey(0)
    kx, kw, kb = jax.random.split(key, 3)
    x = jax.random.normal(kx, (B, S, IN_FEATURES), dtype=jnp.float32)
    weights = jax.random.normal(kw, (OUT_FEATURES, IN_FEATURES), dtype=jnp.float32)
    bias = jax.random.normal(kb, (OUT_FEATURES,), dtype=jnp.float32)

    # Weight prep is hoisted: run once per weight, reuse across every forward.
    wq, beta = bitlinear_prepare_weights(weights, use_int8=_use_int8_mxu())

    out = bitlinear_forward(x, wq, beta, bias, nl_next=False)
    out = jax.block_until_ready(out)
    assert out.shape == (B, S, OUT_FEATURES)
    ref = _bitlinear_reference(x, weights, bias, nl_next=False)
    # Tolerance covers a possible +-1 flip of one quantized value at a round-half
    # boundary (worth dequant*beta ~= 0.02 per output element).
    assert jnp.allclose(out, ref, rtol=0.0, atol=0.1), float(jnp.max(jnp.abs(out - ref)))

    out2 = bitlinear_forward(x, wq, beta, bias, nl_next=True)
    out2 = jax.block_until_ready(out2)
    ref2 = _bitlinear_reference(x, weights, bias, nl_next=True)
    assert jnp.allclose(out2, ref2, rtol=0.0, atol=0.1), float(jnp.max(jnp.abs(out2 - ref2)))

    print("KERNEL_OK")
</pallas_src>

<mosaic_0001>
module attributes {stable_mosaic.version = 11 : i64} {
  func.func @_weight_quant_kernel(%arg0: i32, %arg1: i32, %arg2: memref<1xf32, #tpu.memory_space<smem>>, %arg3: memref<256x128xf32, #tpu.memory_space<vmem>>, %arg4: memref<128x256xbf16, #tpu.memory_space<vmem>>) attributes {dimension_semantics = [#tpu.dimension_semantics<parallel>, #tpu.dimension_semantics<parallel>], iteration_bounds = array<i64: 1, 1>, scalar_prefetch = 0 : i64, scratch_operands = 0 : i64, tpu.core_type = #tpu.core_type<tc>, window_params = [{transform_indices = @transform_0, window_bounds = array<i64: 1>}, {transform_indices = @transform_1, window_bounds = array<i64: 256, 128>}, {transform_indices = @transform_2, window_bounds = array<i64: 128, 256>}]} {
    %c0 = arith.constant 0 : index
    %c0_0 = arith.constant 0 : index
    %0 = vector.load %arg3[%c0, %c0_0] : memref<256x128xf32, #tpu.memory_space<vmem>>, vector<256x128xf32>
    %c0_1 = arith.constant 0 : index
    %1 = memref.load %arg2[%c0_1] : memref<1xf32, #tpu.memory_space<smem>>
    %2 = vector.broadcast %1 : f32 to vector<256x128xf32>
    %3 = arith.subf %0, %2 : vector<256x128xf32>
    %cst = arith.constant 0.000000e+00 : f32
    %4 = vector.broadcast %cst : f32 to vector<256x128xf32>
    %5 = arith.cmpf ogt, %3, %4 : vector<256x128xf32>
    %6 = arith.extui %5 : vector<256x128xi1> to vector<256x128xi32>
    %cst_2 = arith.constant 0.000000e+00 : f32
    %7 = vector.broadcast %cst_2 : f32 to vector<256x128xf32>
    %8 = arith.cmpf olt, %3, %7 : vector<256x128xf32>
    %9 = arith.extui %8 : vector<256x128xi1> to vector<256x128xi32>
    %10 = arith.subi %6, %9 : vector<256x128xi32>
    %11 = tpu.transpose %10, [1, 0] : vector<256x128xi32> -> vector<128x256xi32>
    %12 = arith.sitofp %11 : vector<128x256xi32> to vector<128x256xbf16>
    %c0_3 = arith.constant 0 : index
    %c0_4 = arith.constant 0 : index
    %13 = vector.load %arg4[%c0_3, %c0_4] : memref<128x256xbf16, #tpu.memory_space<vmem>>, vector<128x256xbf16>
    tpu.vector_store %arg4[%c0_3, %c0_4], %12 {strides = array<i32>} : memref<128x256xbf16, #tpu.memory_space<vmem>>, vector<128x256xbf16>,
    return
  }
  func.func @transform_0(%arg0: i32, %arg1: i32) -> i32 {
    %c0_i32 = arith.constant 0 : i32
    %c0_i32_0 = arith.constant 0 : i32
    return %c0_i32 : i32
  }
  func.func @transform_1(%arg0: i32, %arg1: i32) -> (i32, i32) {
    %c0_i32 = arith.constant 0 : i32
    return %arg0, %arg1 : i32, i32
  }
  func.func @transform_2(%arg0: i32, %arg1: i32) -> (i32, i32) {
    %c0_i32 = arith.constant 0 : i32
    return %arg1, %arg0 : i32, i32
  }
}

</mosaic_0001>

<llo_original>
// kernel: bitlinear_prepare_weights.1
$region0: #{bitlinear_prepare_weights.1}
  #allocation0 [shape = 'u32[]', space=smem, size = 0x4, offset = 0x4, fixed_abs, tag = 'smem constant byte address 0x4 - core index']
  #allocation1 [shape = 'u32[144,128]{1,0:T(1,128)}', space=vmem, size = 0x12000, scoped, tag = 'internal scratch']
  #allocation2 [shape = 'f32[1]{0:T(128)S(6)}', space=smem, size = 0x200, scoped, tag = 'scoped memory for bitlinear_prepare_weights.1']
  %s0 = inlined_call_operand.<no memory space> [shape: f32[1], index: 0, kind: input, shape index: {}]
  %s1 = inlined_call_operand.vmem [shape: f32[256,128], index: 1, kind: input, shape index: {}]
  %s2 = inlined_call_operand.hbm [shape: bf16[128,256], index: 2, kind: output, shape index: {}]
  %s3 = sld [smem:[#allocation0]]
  $region18: #{bitlinear_prepare_weights.1} parent=0
    _
  %s5 = ssub.s32 1, %s3
  %s6 = scalar_select 0, %s5, %s3
  %7 = sst [smem:[#allocation2]] %s0
  $region1: #{bitlinear_prepare_weights.1} parent=0
    #allocation3 [shape = 'u8[65536]{0}', space=vmem, size = 0x10000, scoped, tag = 'output window, operand 0, single buffered']
    #allocation4 [shape = 's32[1]{0}', space=sflag, size = 0x4, scoped, tag = 'scoped memory for bitlinear_prepare_weights.1']
    %8 = vsyncpa [#allocation4], 0
    // Predicated region
    $region2: #{bitlinear_prepare_weights.1} parent=1 // pred_check
      _
    $region3: #{bitlinear_prepare_weights.1} parent=1 // pred_check_branch
      %10 = sbr.rel (0) target = $region5
    $region4: #{bitlinear_prepare_weights.1} parent=1 // pred_region
      _
    $region5: #{bitlinear_prepare_weights.1} parent=1 // pred_fallthru
      _
    // Predicated region
    $region6: #{bitlinear_prepare_weights.1} parent=1 // pred_check
      _
    $region7: #{bitlinear_prepare_weights.1} parent=1 // pred_check_branch
      %12 = sbr.rel (0) target = $region9
    $region8: #{bitlinear_prepare_weights.1} parent=1 // pred_region
      _
    $region9: #{bitlinear_prepare_weights.1} parent=1 // pred_fallthru
      _
    %v13 = vld [vmem:[%s1] sm:$0xff]
    %v14 = vld [vmem:[%s1 + $0x8] sm:$0xff]
    %v15 = vld [vmem:[%s1 + $0x10] sm:$0xff]
    %v16 = vld [vmem:[%s1 + $0x18] sm:$0xff]
    %v17 = vld [vmem:[%s1 + $0x20] sm:$0xff]
    %v18 = vld [vmem:[%s1 + $0x28] sm:$0xff]
    %v19 = vld [vmem:[%s1 + $0x30] sm:$0xff]
    %v20 = vld [vmem:[%s1 + $0x38] sm:$0xff]
    %v21 = vld [vmem:[%s1 + $0x40] sm:$0xff]
    %v22 = vld [vmem:[%s1 + $0x48] sm:$0xff]
    %v23 = vld [vmem:[%s1 + $0x50] sm:$0xff]
    %v24 = vld [vmem:[%s1 + $0x58] sm:$0xff]
    %v25 = vld [vmem:[%s1 + $0x60] sm:$0xff]
    %v26 = vld [vmem:[%s1 + $0x68] sm:$0xff]
    %v27 = vld [vmem:[%s1 + $0x70] sm:$0xff]
    %v28 = vld [vmem:[%s1 + $0x78] sm:$0xff]
    %v29 = vld [vmem:[%s1 + $0x80] sm:$0xff]
    %v30 = vld [vmem:[%s1 + $0x88] sm:$0xff]
    %v31 = vld [vmem:[%s1 + $0x90] sm:$0xff]
    %v32 = vld [vmem:[%s1 + $0x98] sm:$0xff]
    %v33 = vld [vmem:[%s1 + $0xa0] sm:$0xff]
    %v34 = vld [vmem:[%s1 + $0xa8] sm:$0xff]
    %v35 = vld [vmem:[%s1 + $0xb0] sm:$0xff]
    %v36 = vld [vmem:[%s1 + $0xb8] sm:$0xff]
    %v37 = vld [vmem:[%s1 + $0xc0] sm:$0xff]
    %v38 = vld [vmem:[%s1 + $0xc8] sm:$0xff]
    %v39 = vld [vmem:[%s1 + $0xd0] sm:$0xff]
    %v40 = vld [vmem:[%s1 + $0xd8] sm:$0xff]
    %v41 = vld [vmem:[%s1 + $0xe0] sm:$0xff]
    %v42 = vld [vmem:[%s1 + $0xe8] sm:$0xff]
    %v43 = vld [vmem:[%s1 + $0xf0] sm:$0xff]
    %v44 = vld [vmem:[%s1 + $0xf8] sm:$0xff]
    %s45 = sld [smem:[#allocation2]]
    %v46 = vstv %s45
    %v47 = vsub.f32 %v13, %v46
    %v48 = vsub.f32 %v14, %v46
    %v49 = vsub.f32 %v15, %v46
    %v50 = vsub.f32 %v16, %v46
    %v51 = vsub.f32 %v17, %v46
    %v52 = vsub.f32 %v18, %v46
    %v53 = vsub.f32 %v19, %v46
    %v54 = vsub.f32 %v20, %v46
    %v55 = vsub.f32 %v21, %v46
    %v56 = vsub.f32 %v22, %v46
    %v57 = vsub.f32 %v23, %v46
    %v58 = vsub.f32 %v24, %v46
    %v59 = vsub.f32 %v25, %v46
    %v60 = vsub.f32 %v26, %v46
    %v61 = vsub.f32 %v27, %v46
    %v62 = vsub.f32 %v28, %v46
    %v63 = vsub.f32 %v29, %v46
    %v64 = vsub.f32 %v30, %v46
    %v65 = vsub.f32 %v31, %v46
    %v66 = vsub.f32 %v32, %v46
    %v67 = vsub.f32 %v33, %v46
    %v68 = vsub.f32 %v34, %v46
    %v69 = vsub.f32 %v35, %v46
    %v70 = vsub.f32 %v36, %v46
    %v71 = vsub.f32 %v37, %v46
    %v72 = vsub.f32 %v38, %v46
    %v73 = vsub.f32 %v39, %v46
    %v74 = vsub.f32 %v40, %v46
    %v75 = vsub.f32 %v41, %v46
    %v76 = vsub.f32 %v42, %v46
    %v77 = vsub.f32 %v43, %v46
    %v78 = vsub.f32 %v44, %v46
    %vm79 = vcmp.gt.f32.partialorder %v47, 0.0
    %vm80 = vcmp.gt.f32.partialorder %v48, 0.0
    %vm81 = vcmp.gt.f32.partialorder %v49, 0.0
    %vm82 = vcmp.gt.f32.partialorder %v50, 0.0
    %vm83 = vcmp.gt.f32.partialorder %v51, 0.0
    %vm84 = vcmp.gt.f32.partialorder %v52, 0.0
    %vm85 = vcmp.gt.f32.partialorder %v53, 0.0
    %vm86 = vcmp.gt.f32.partialorder %v54, 0.0
    %vm87 = vcmp.gt.f32.partialorder %v55, 0.0
    %vm88 = vcmp.gt.f32.partialorder %v56, 0.0
    %vm89 = vcmp.gt.f32.partialorder %v57, 0.0
    %vm90 = vcmp.gt.f32.partialorder %v58, 0.0
    %vm91 = vcmp.gt.f32.partialorder %v59, 0.0
    %vm92 = vcmp.gt.f32.partialorder %v60, 0.0
    %vm93 = vcmp.gt.f32.partialorder %v61, 0.0
    %vm94 = vcmp.gt.f32.partialorder %v62, 0.0
    %vm95 = vcmp.gt.f32.partialorder %v63, 0.0
    %vm96 = vcmp.gt.f32.partialorder %v64, 0.0
    %vm97 = vcmp.gt.f32.partialorder %v65, 0.0
    %vm98 = vcmp.gt.f32.partialorder %v66, 0.0
    %vm99 = vcmp.gt.f32.partialorder %v67, 0.0
    %vm100 = vcmp.gt.f32.partialorder %v68, 0.0
    %vm101 = vcmp.gt.f32.partialorder %v69, 0.0
    %vm102 = vcmp.gt.f32.partialorder %v70, 0.0
    %vm103 = vcmp.gt.f32.partialorder %v71, 0.0
    %vm104 = vcmp.gt.f32.partialorder %v72, 0.0
    %vm105 = vcmp.gt.f32.partialorder %v73, 0.0
    %vm106 = vcmp.gt.f32.partialorder %v74, 0.0
    %vm107 = vcmp.gt.f32.partialorder %v75, 0.0
    %vm108 = vcmp.gt.f32.partialorder %v76, 0.0
    %vm109 = vcmp.gt.f32.partialorder %v77, 0.0
    %vm110 = vcmp.gt.f32.partialorder %v78, 0.0
    %v111 = vsel %vm79, 1, 0
    %v112 = vsel %vm80, 1, 0
    %v113 = vsel %vm81, 1, 0
    %v114 = vsel %vm82, 1, 0
    %v115 = vsel %vm83, 1, 0
    %v116 = vsel %vm84, 1, 0
    %v117 = vsel %vm85, 1, 0
    %v118 = vsel %vm86, 1, 0
    %v119 = vsel %vm87, 1, 0
    %v120 = vsel %vm88, 1, 0
    %v121 = vsel %vm89, 1, 0
    %v122 = vsel %vm90, 1, 0
    %v123 = vsel %vm91, 1, 0
    %v124 = vsel %vm92, 1, 0
    %v125 = vsel %vm93, 1, 0
    %v126 = vsel %vm94, 1, 0
    %v127 = vsel %vm95, 1, 0
    %v128 = vsel %vm96, 1, 0
    %v129 = vsel %vm97, 1, 0
    %v130 = vsel %vm98, 1, 0
    %v131 = vsel %vm99, 1, 0
    %v132 = vsel %vm100, 1, 0
    %v133 = vsel %vm101, 1, 0
    %v134 = vsel %vm102, 1, 0
    %v135 = vsel %vm103, 1, 0
    %v136 = vsel %vm104, 1, 0
    %v137 = vsel %vm105, 1, 0
    %v138 = vsel %vm106, 1, 0
    %v139 = vsel %vm107, 1, 0
    %v140 = vsel %vm108, 1, 0
    %v141 = vsel %vm109, 1, 0
    %v142 = vsel %vm110, 1, 0
    %vm143 = vcmp.lt.f32.partialorder %v47, 0.0
    %vm144 = vcmp.lt.f32.partialorder %v48, 0.0
    %vm145 = vcmp.lt.f32.partialorder %v49, 0.0
    %vm146 = vcmp.lt.f32.partialorder %v50, 0.0
    %vm147 = vcmp.lt.f32.partialorder %v51, 0.0
    %vm148 = vcmp.lt.f32.partialorder %v52, 0.0
    %vm149 = vcmp.lt.f32.partialorder %v53, 0.0
    %vm150 = vcmp.lt.f32.partialorder %v54, 0.0
    %vm151 = vcmp.lt.f32.partialorder %v55, 0.0
    %vm152 = vcmp.lt.f32.partialorder %v56, 0.0
    %vm153 = vcmp.lt.f32.partialorder %v57, 0.0
    %vm154 = vcmp.lt.f32.partialorder %v58, 0.0
    %vm155 = vcmp.lt.f32.partialorder %v59, 0.0
    %vm156 = vcmp.lt.f32.partialorder %v60, 0.0
    %vm157 = vcmp.lt.f32.partialorder %v61, 0.0
    %vm158 = vcmp.lt.f32.partialorder %v62, 0.0
    %vm159 = vcmp.lt.f32.partialorder %v63, 0.0
    %vm160 = vcmp.lt.f32.partialorder %v64, 0.0
    %vm161 = vcmp.lt.f32.partialorder %v65, 0.0
    %vm162 = vcmp.lt.f32.partialorder %v66, 0.0
    %vm163 = vcmp.lt.f32.partialorder %v67, 0.0
    %vm164 = vcmp.lt.f32.partialorder %v68, 0.0
    %vm165 = vcmp.lt.f32.partialorder %v69, 0.0
    %vm166 = vcmp.lt.f32.partialorder %v70, 0.0
    %vm167 = vcmp.lt.f32.partialorder %v71, 0.0
    %vm168 = vcmp.lt.f32.partialorder %v72, 0.0
    %vm169 = vcmp.lt.f32.partialorder %v73, 0.0
    %vm170 = vcmp.lt.f32.partialorder %v74, 0.0
    %vm171 = vcmp.lt.f32.partialorder %v75, 0.0
    %vm172 = vcmp.lt.f32.partialorder %v76, 0.0
    %vm173 = vcmp.lt.f32.partialorder %v77, 0.0
    %vm174 = vcmp.lt.f32.partialorder %v78, 0.0
    %v175 = vsel %vm143, 1, 0
    %v176 = vsel %vm144, 1, 0
    %v177 = vsel %vm145, 1, 0
    %v178 = vsel %vm146, 1, 0
    %v179 = vsel %vm147, 1, 0
    %v180 = vsel %vm148, 1, 0
    %v181 = vsel %vm149, 1, 0
    %v182 = vsel %vm150, 1, 0
    %v183 = vsel %vm151, 1, 0
    %v184 = vsel %vm152, 1, 0
    %v185 = vsel %vm153, 1, 0
    %v186 = vsel %vm154, 1, 0
    %v187 = vsel %vm155, 1, 0
    %v188 = vsel %vm156, 1, 0
    %v189 = vsel %vm157, 1, 0
    %v190 = vsel %vm158, 1, 0
    %v191 = vsel %vm159, 1, 0
    %v192 = vsel %vm160, 1, 0
    %v193 = vsel %vm161, 1, 0
    %v194 = vsel %vm162, 1, 0
    %v195 = vsel %vm163, 1, 0
    %v196 = vsel %vm164, 1, 0
    %v197 = vsel %vm165, 1, 0
    %v198 = vsel %vm166, 1, 0
    %v199 = vsel %vm167, 1, 0
    %v200 = vsel %vm168, 1, 0
    %v201 = vsel %vm169, 1, 0
    %v202 = vsel %vm170, 1, 0
    %v203 = vsel %vm171, 1, 0
    %v204 = vsel %vm172, 1, 0
    %v205 = vsel %vm173, 1, 0
    %v206 = vsel %vm174, 1, 0
    %v207 = vsub.s32 %v111, %v175
    %v208 = vsub.s32 %v112, %v176
    %v209 = vsub.s32 %v113, %v177
    %v210 = vsub.s32 %v114, %v178
    %v211 = vsub.s32 %v115, %v179
    %v212 = vsub.s32 %v116, %v180
    %v213 = vsub.s32 %v117, %v181
    %v214 = vsub.s32 %v118, %v182
    %v215 = vsub.s32 %v119, %v183
    %v216 = vsub.s32 %v120, %v184
    %v217 = vsub.s32 %v121, %v185
    %v218 = vsub.s32 %v122, %v186
    %v219 = vsub.s32 %v123, %v187
    %v220 = vsub.s32 %v124, %v188
    %v221 = vsub.s32 %v125, %v189
    %v222 = vsub.s32 %v126, %v190
    %v223 = vsub.s32 %v127, %v191
    %v224 = vsub.s32 %v128, %v192
    %v225 = vsub.s32 %v129, %v193
    %v226 = vsub.s32 %v130, %v194
    %v227 = vsub.s32 %v131, %v195
    %v228 = vsub.s32 %v132, %v196
    %v229 = vsub.s32 %v133, %v197
    %v230 = vsub.s32 %v134, %v198
    %v231 = vsub.s32 %v135, %v199
    %v232 = vsub.s32 %v136, %v200
    %v233 = vsub.s32 %v137, %v201
    %v234 = vsub.s32 %v138, %v202
    %v235 = vsub.s32 %v139, %v203
    %v236 = vsub.s32 %v140, %v204
    %v237 = vsub.s32 %v141, %v205
    %v238 = vsub.s32 %v142, %v206
    %239 = vxpose.xlu0.b32.start [1/16] %v207, 128
    %240 = vxpose.xlu0.b32.cont [2/16] %v208, 128
    %241 = vxpose.xlu0.b32.cont [3/16] %v209, 128
    %242 = vxpose.xlu0.b32.cont [4/16] %v210, 128
    %243 = vxpose.xlu0.b32.cont [5/16] %v211, 128
    %244 = vxpose.xlu0.b32.cont [6/16] %v212, 128
    %245 = vxpose.xlu0.b32.cont [7/16] %v213, 128
    %246 = vxpose.xlu0.b32.cont [8/16] %v214, 128
    %247 = vxpose.xlu0.b32.cont [9/16] %v215, 128
    %248 = vxpose.xlu0.b32.cont [10/16] %v216, 128
    %249 = vxpose.xlu0.b32.cont [11/16] %v217, 128
    %250 = vxpose.xlu0.b32.cont [12/16] %v218, 128
    %251 = vxpose.xlu0.b32.cont [13/16] %v219, 128
    %252 = vxpose.xlu0.b32.cont [14/16] %v220, 128
    %253 = vxpose.xlu0.b32.cont [15/16] %v221, 128
    %254 = vxpose.xlu0.b32.end [16/16] %v222, 128
    %v255 = vpop.trf.xlu0
    %v256 = vpop.trf.xlu0
    %v257 = vpop.trf.xlu0
    %v258 = vpop.trf.xlu0
    %v259 = vpop.trf.xlu0
    %v260 = vpop.trf.xlu0
    %v261 = vpop.trf.xlu0
    %v262 = vpop.trf.xlu0
    %v263 = vpop.trf.xlu0
    %v264 = vpop.trf.xlu0
    %v265 = vpop.trf.xlu0
    %v266 = vpop.trf.xlu0
    %v267 = vpop.trf.xlu0
    %v268 = vpop.trf.xlu0
    %v269 = vpop.trf.xlu0
    %v270 = vpop.trf.xlu0
    %271 = vxpose.xlu0.b32.start [1/16] %v223, 128
    %272 = vxpose.xlu0.b32.cont [2/16] %v224, 128
    %273 = vxpose.xlu0.b32.cont [3/16] %v225, 128
    %274 = vxpose.xlu0.b32.cont [4/16] %v226, 128
    %275 = vxpose.xlu0.b32.cont [5/16] %v227, 128
    %276 = vxpose.xlu0.b32.cont [6/16] %v228, 128
    %277 = vxpose.xlu0.b32.cont [7/16] %v229, 128
    %278 = vxpose.xlu0.b32.cont [8/16] %v230, 128
    %279 = vxpose.xlu0.b32.cont [9/16] %v231, 128
    %280 = vxpose.xlu0.b32.cont [10/16] %v232, 128
    %281 = vxpose.xlu0.b32.cont [11/16] %v233, 128
    %282 = vxpose.xlu0.b32.cont [12/16] %v234, 128
    %283 = vxpose.xlu0.b32.cont [13/16] %v235, 128
    %284 = vxpose.xlu0.b32.cont [14/16] %v236, 128
    %285 = vxpose.xlu0.b32.cont [15/16] %v237, 128
    %286 = vxpose.xlu0.b32.end [16/16] %v238, 128
    %v287 = vpop.trf.xlu0
    %v288 = vpop.trf.xlu0
    %v289 = vpop.trf.xlu0
    %v290 = vpop.trf.xlu0
    %v291 = vpop.trf.xlu0
    %v292 = vpop.trf.xlu0
    %v293 = vpop.trf.xlu0
    %v294 = vpop.trf.xlu0
    %v295 = vpop.trf.xlu0
    %v296 = vpop.trf.xlu0
    %v297 = vpop.trf.xlu0
    %v298 = vpop.trf.xlu0
    %v299 = vpop.trf.xlu0
    %v300 = vpop.trf.xlu0
    %v301 = vpop.trf.xlu0
    %v302 = vpop.trf.xlu0
    %v303 = vcvt.s32.f32 %v255
    %v304 = vcvt.s32.f32 %v287
    %v305 = vcvt.s32.f32 %v256
    %v306 = vcvt.s32.f32 %v288
    %v307 = vcvt.s32.f32 %v257
    %v308 = vcvt.s32.f32 %v289
    %v309 = vcvt.s32.f32 %v258
    %v310 = vcvt.s32.f32 %v290
    %v311 = vcvt.s32.f32 %v259
    %v312 = vcvt.s32.f32 %v291
    %v313 = vcvt.s32.f32 %v260
    %v314 = vcvt.s32.f32 %v292
    %v315 = vcvt.s32.f32 %v261
    %v316 = vcvt.s32.f32 %v293
    %v317 = vcvt.s32.f32 %v262
    %v318 = vcvt.s32.f32 %v294
    %v319 = vcvt.s32.f32 %v263
    %v320 = vcvt.s32.f32 %v295
    %v321 = vcvt.s32.f32 %v264
    %v322 = vcvt.s32.f32 %v296
    %v323 = vcvt.s32.f32 %v265
    %v324 = vcvt.s32.f32 %v297
    %v325 = vcvt.s32.f32 %v266
    %v326 = vcvt.s32.f32 %v298
    %v327 = vcvt.s32.f32 %v267
    %v328 = vcvt.s32.f32 %v299
    %v329 = vcvt.s32.f32 %v268
    %v330 = vcvt.s32.f32 %v300
    %v331 = vcvt.s32.f32 %v269
    %v332 = vcvt.s32.f32 %v301
    %v333 = vcvt.s32.f32 %v270
    %v334 = vcvt.s32.f32 %v302
    %v335 = vpack.c.bf16 %v305, %v303
    %v336 = vpack.c.bf16 %v306, %v304
    %v337 = vpack.c.bf16 %v309, %v307
    %v338 = vpack.c.bf16 %v310, %v308
    %v339 = vpack.c.bf16 %v313, %v311
    %v340 = vpack.c.bf16 %v314, %v312
    %v341 = vpack.c.bf16 %v317, %v315
    %v342 = vpack.c.bf16 %v318, %v316
    %v343 = vpack.c.bf16 %v321, %v319
    %v344 = vpack.c.bf16 %v322, %v320
    %v345 = vpack.c.bf16 %v325, %v323
    %v346 = vpack.c.bf16 %v326, %v324
    %v347 = vpack.c.bf16 %v329, %v327
    %v348 = vpack.c.bf16 %v330, %v328
    %v349 = vpack.c.bf16 %v333, %v331
    %v350 = vpack.c.bf16 %v334, %v332
    %v367 = vunpack.c.l.b16 %v335
    %v368 = vunpack.c.l.b16 %v336
    %v369 = vunpack.c.h.b16 %v335
    %v370 = vunpack.c.h.b16 %v336
    %v371 = vunpack.c.l.b16 %v337
    %v372 = vunpack.c.l.b16 %v338
    %v373 = vunpack.c.h.b16 %v337
    %v374 = vunpack.c.h.b16 %v338
    %v375 = vunpack.c.l.b16 %v339
    %v376 = vunpack.c.l.b16 %v340
    %v377 = vunpack.c.h.b16 %v339
    %v378 = vunpack.c.h.b16 %v340
    %v379 = vunpack.c.l.b16 %v341
    %v380 = vunpack.c.l.b16 %v342
    %v381 = vunpack.c.h.b16 %v341
    %v382 = vunpack.c.h.b16 %v342
    %v383 = vunpack.c.l.b16 %v343
    %v384 = vunpack.c.l.b16 %v344
    %v385 = vunpack.c.h.b16 %v343
    %v386 = vunpack.c.h.b16 %v344
    %v387 = vunpack.c.l.b16 %v345
    %v388 = vunpack.c.l.b16 %v346
    %v389 = vunpack.c.h.b16 %v345
    %v390 = vunpack.c.h.b16 %v346
    %v391 = vunpack.c.l.b16 %v347
    %v392 = vunpack.c.l.b16 %v348
    %v393 = vunpack.c.h.b16 %v347
    %v394 = vunpack.c.h.b16 %v348
    %v395 = vunpack.c.l.b16 %v349
    %v396 = vunpack.c.l.b16 %v350
    %v397 = vunpack.c.h.b16 %v349
    %v398 = vunpack.c.h.b16 %v350
    %v399 = vpack.c.b16 %v368, %v367
    %v400 = vpack.c.b16 %v370, %v369
    %v401 = vpack.c.b16 %v372, %v371
    %v402 = vpack.c.b16 %v374, %v373
    %v403 = vpack.c.b16 %v376, %v375
    %v404 = vpack.c.b16 %v378, %v377
    %v405 = vpack.c.b16 %v380, %v379
    %v406 = vpack.c.b16 %v382, %v381
    %v407 = vpack.c.b16 %v384, %v383
    %v408 = vpack.c.b16 %v386, %v385
    %v409 = vpack.c.b16 %v388, %v387
    %v410 = vpack.c.b16 %v390, %v389
    %v411 = vpack.c.b16 %v392, %v391
    %v412 = vpack.c.b16 %v394, %v393
    %v413 = vpack.c.b16 %v396, %v395
    %v414 = vpack.c.b16 %v398, %v397
    %431 = vst [vmem:[#allocation3] sm:$0xff] %v399
    %432 = vst [vmem:[#allocation3 + $0x8] sm:$0xff] %v400
    %433 = vst [vmem:[#allocation3 + $0x10] sm:$0xff] %v401
    %434 = vst [vmem:[#allocation3 + $0x18] sm:$0xff] %v402
    %435 = vst [vmem:[#allocation3 + $0x20] sm:$0xff] %v403
    %436 = vst [vmem:[#allocation3 + $0x28] sm:$0xff] %v404
    %437 = vst [vmem:[#allocation3 + $0x30] sm:$0xff] %v405
    %438 = vst [vmem:[#allocation3 + $0x38] sm:$0xff] %v406
    %439 = vst [vmem:[#allocation3 + $0x40] sm:$0xff] %v407
    %440 = vst [vmem:[#allocation3 + $0x48] sm:$0xff] %v408
    %441 = vst [vmem:[#allocation3 + $0x50] sm:$0xff] %v409
    %442 = vst [vmem:[#allocation3 + $0x58] sm:$0xff] %v410
    %443 = vst [vmem:[#allocation3 + $0x60] sm:$0xff] %v411
    %444 = vst [vmem:[#allocation3 + $0x68] sm:$0xff] %v412
    %445 = vst [vmem:[#allocation3 + $0x70] sm:$0xff] %v413
    %446 = vst [vmem:[#allocation3 + $0x78] sm:$0xff] %v414
    // Predicated region
    $region10: #{bitlinear_prepare_weights.1} parent=1 // pred_check
      _
    $region11: #{bitlinear_prepare_weights.1} parent=1 // pred_check_branch
      %448 = sbr.rel (0) target = $region13
    $region12: #{bitlinear_prepare_weights.1} parent=1 // pred_region
      %s450 = ssub.s32 2048, 2048
      %451 = vsyncadd [#allocation4], %s450
      %s452 = sshll.u32 [#allocation3], 4
      %s453 = int_to_ptr.vmem [resolvable:$true] %s452
      %458 = dma.vmem_to_hbm [thread:$0]  %s453, 2048, %s2, [#allocation4], 128, 128, 8
    $region13: #{bitlinear_prepare_weights.1} parent=1 // pred_fallthru
      _
    // Predicated region
    $region14: #{bitlinear_prepare_weights.1} parent=1 // pred_check
      _
    $region15: #{bitlinear_prepare_weights.1} parent=1 // pred_check_branch
      %460 = sbr.rel (0) target = $region17
    $region16: #{bitlinear_prepare_weights.1} parent=1 // pred_region
      %461 = dma.done [#allocation4], 2048
    $region17: #{bitlinear_prepare_weights.1} parent=1 // pred_fallthru
      _
    %462 = vsyncpa [#allocation4], 1

</llo_original>
